<compile_context>
chip_gen: v7x
topology: tpu7x:2x2x1
jax: 0.10.0
libtpu: 0.0.40
codegen_flags: <defaults>
</compile_context>

<pallas_src>
import jax
import jax.numpy as jnp
import numpy as np
from jax import lax
from jax.experimental import pallas as pl
from jax.experimental.pallas import tpu as pltpu

EPS = 1e-6  # norm_layer = partial(LayerNormGeneral, normalized_dim=(1,2,3), eps=1e-06)


def _pick_tile_n(n):
    """Lane-aligned tile of the N=H*W axis.

    Returns a multiple of 128 whenever n > 128 (a cdiv grid with a clipped tail
    tile handles non-dividing n, e.g. 3136/784/196); returns n itself only when
    n <= 128 (single, possibly masked, tiny tile)."""
    if n <= 128:
        return n
    for t in (512, 384, 256, 128):          # exact divisor -> no tail waste
        if n % t == 0:
            return t
    # No 128-multiple divides n: pick the 128-aligned tile (>=256) wasting least.
    return min((512, 256), key=lambda t: ((-(-n // t)) * t - n, -t))


def _metaformer_kernel(x_ref, a1_ref, d1_ref, A_ref, D_ref,
                       w1t_ref, w2t_ref, bias_ref, o_ref):
    # One (C, TN) tile of one sample: channels on sublanes, pixels on lanes.
    xc = x_ref[...].astype(jnp.float32)                       # (C, TN)
    a1 = a1_ref[...].astype(jnp.float32)                      # (C, 1)
    d1 = d1_ref[...].astype(jnp.float32)
    A = A_ref[...].astype(jnp.float32)
    D = D_ref[...].astype(jnp.float32)
    bias = bias_ref[...].astype(jnp.float32)

    x1 = a1 * xc + d1                                         # residual stream x + norm1(x)
    mm_dtype = w1t_ref.dtype
    y2 = (A * xc + D).astype(mm_dtype)                        # norm2(x1), fully folded affine

    h = jnp.dot(w1t_ref[...], y2,
                preferred_element_type=jnp.float32)           # fc1 -> (Hd, TN)
    r = jnp.maximum(h, 0.0)
    hh = (r * r).astype(mm_dtype)                             # StarReLU scale/bias folded away
    out = jnp.dot(w2t_ref[...], hh,
                  preferred_element_type=jnp.float32)         # fc2 -> (C, TN)

    o_ref[...] = (x1 + out + bias).astype(o_ref.dtype)


def metaformer_block(x_nchw, params, matmul_dtype=jnp.bfloat16):
    """Forward pass of MetaFormer_Block (token_mixer=Identity, in_dim==dim)."""
    B, C, H, W = x_nchw.shape
    N = H * W
    w1 = params["w1"]                      # (C, Hd)  fc1 weight, stored (in, out)
    w2 = params["w2"]                      # (Hd, C)  fc2 weight, stored (in, out)
    Hd = w1.shape[1]
    # Folds below assume: bias-free fc1/fc2, LayerNormGeneral with scale+bias,
    # token_mixer=Identity, no layer/res scale, in_dim == dim.
    assert w1.shape == (C, Hd) and w2.shape == (Hd, C), "fc1/fc2 weight shapes"
    sr = params["sr"].astype(jnp.float32)  # [StarReLU scale, StarReLU bias]

    # Free reshape: NCHW -> (B, C, N).  No HBM transpose passes.
    x = x_nchw.reshape(B, C, N)
    xf = x.astype(jnp.float32)

    g1 = params["g1"].reshape(1, C).astype(jnp.float32)
    b1 = params["b1"].reshape(1, C).astype(jnp.float32)
    g2 = params["g2"].reshape(1, C).astype(jnp.float32)
    b2 = params["b2"].reshape(1, C).astype(jnp.float32)

    # ---- Per-batch norm stats in XLA: two fused reduction passes over x plus
    # tiny (B, C) math.  Centered second moments (no E[x^2]-m^2 cancellation);
    # norm2 stats of x1 = a1*x + d1 derived analytically, x1 never materialised.
    inv_cnt = 1.0 / float(C * N)
    rowsum = jnp.sum(xf, axis=-1)                                       # (B, C)
    m1 = jnp.sum(rowsum, axis=-1, keepdims=True) * inv_cnt              # (B, 1)
    crowsq = jnp.sum((xf - m1[:, :, None]) ** 2, axis=-1)               # (B, C)
    v1 = jnp.sum(crowsq, axis=-1, keepdims=True) * inv_cnt              # (B, 1)
    rs1 = lax.rsqrt(v1 + EPS)
    a1 = 1.0 + g1 * rs1                                                 # residual + norm1 scale
    d1 = b1 - (m1 * rs1) * g1

    crowsum = rowsum - N * m1                                           # sum_n (x - m1)
    m2 = (jnp.sum(a1 * rowsum, axis=-1, keepdims=True)
          + N * jnp.sum(d1, axis=-1, keepdims=True)) * inv_cnt
    e = a1 * m1 + d1 - m2
    v2 = (jnp.sum(a1 * a1 * crowsq + 2.0 * a1 * e * crowsum, axis=-1, keepdims=True)
          + N * jnp.sum(e * e, axis=-1, keepdims=True)) * inv_cnt
    rs2 = lax.rsqrt(v2 + EPS)
    a2 = g2 * rs2
    d2 = b2 - (m2 * rs2) * g2
    A_f = a2 * a1                                # folded  norm2( x + norm1(x) )
    D_f = a2 * d1 + d2

    a1_in = a1.reshape(B, C, 1)
    d1_in = d1.reshape(B, C, 1)
    A_in = A_f.reshape(B, C, 1)
    D_in = D_f.reshape(B, C, 1)

    # Weights oriented so matmuls keep N on the lane axis (weights on the left).
    w1t = jnp.transpose(w1).astype(matmul_dtype)                                 # (Hd, C)
    # Fold StarReLU: W2 @ (s*r^2 + b) = (s*W2) @ r^2 + b * colsum(W2).
    w2t = (sr[0] * jnp.transpose(w2).astype(jnp.float32)).astype(matmul_dtype)   # (C, Hd)
    bias_c = (sr[1] * jnp.sum(w2.astype(jnp.float32), axis=0)).reshape(C, 1)     # (C, 1)

    TN = _pick_tile_n(N)
    NT = pl.cdiv(N, TN)

    # VMEM budget for the chosen tiling (+ headroom), clamped to hardware capacity.
    xb = np.dtype(x_nchw.dtype).itemsize
    wb = np.dtype(matmul_dtype).itemsize
    est = (2 * C * TN * xb + 2 * C * TN * xb        # x-in / out tiles, double buffered
           + 2 * 2 * Hd * C * wb                    # w1t + w2t (double buffered by pipeline)
           + 3 * C * TN * 4                         # f32 temps (xc, x1, y2)
           + Hd * TN * (4 + wb)                     # hidden tile (f32 acc + bf16 cast)
           + C * TN * (4 + wb)                      # fc2 tile (f32 acc + cast)
           + 64 * 1024)                             # small per-batch vectors / slack
    try:
        cap = pltpu.get_tpu_info().vmem_capacity_bytes
    except Exception:
        cap = 64 * 1024 * 1024                      # conservative (v7x per-TC physical)
    vmem_limit = int(min(max(2 * est, 32 * 1024 * 1024), int(cap * 0.85)))

    per_b = lambda b, j: (b, 0, 0)
    const2 = lambda b, j: (0, 0)
    out = pl.pallas_call(
        _metaformer_kernel,
        out_shape=jax.ShapeDtypeStruct((B, C, N), x_nchw.dtype),
        grid_spec=pltpu.PrefetchScalarGridSpec(
            num_scalar_prefetch=0,
            grid=(B, NT),
            in_specs=[
                pl.BlockSpec((None, C, TN), lambda b, j: (b, 0, j)),   # x tile
                pl.BlockSpec((None, C, 1), per_b),                     # a1 (residual scale)
                pl.BlockSpec((None, C, 1), per_b),                     # d1 (residual shift)
                pl.BlockSpec((None, C, 1), per_b),                     # A  (folded norm2 scale)
                pl.BlockSpec((None, C, 1), per_b),                     # D  (folded norm2 shift)
                # TODO(synk): single-buffer these grid-invariant weights via
                # pipeline_mode=pl.Buffered(1) where supported (saves ~half the
                # weight VMEM on v7x's 64 MiB per-TC).
                pl.BlockSpec((Hd, C), const2),                         # fc1 weight  (Hd, C)
                pl.BlockSpec((C, Hd), const2),                         # s * fc2 weight (C, Hd)
                pl.BlockSpec((C, 1), const2),                          # folded StarReLU bias
            ],
            out_specs=pl.BlockSpec((None, C, TN), lambda b, j: (b, 0, j)),
        ),
        # TODO(synk): for late stages with N < 128 and C % 128 == 0, dispatch a
        # transposed (B, N, C) layout so stores stay lane-dense.
        compiler_params=pltpu.CompilerParams(
            dimension_semantics=("parallel", "parallel"),
            vmem_limit_bytes=vmem_limit),
    )(x, a1_in, d1_in, A_in, D_in, w1t, w2t, bias_c)

    return out.reshape(B, C, H, W)


def ref_forward(x, params):
    """Pure-JAX f32 reference mirroring the PyTorch forward (NCHW)."""
    def norm(z, g, b):
        m = jnp.mean(z, axis=(1, 2, 3), keepdims=True)
        c = z - m
        s = jnp.mean(c * c, axis=(1, 2, 3), keepdims=True)
        return c / jnp.sqrt(s + EPS) * g.reshape(1, -1, 1, 1) + b.reshape(1, -1, 1, 1)

    x = x + norm(x, params["g1"], params["b1"])            # residual + Identity mixer
    y = norm(x, params["g2"], params["b2"])
    h = jnp.einsum("bchw,cd->bdhw", y, params["w1"])       # fc1 (1x1 conv, no bias)
    h = params["sr"][0] * jnp.maximum(h, 0.0) ** 2 + params["sr"][1]
    out = jnp.einsum("bdhw,dc->bchw", h, params["w2"])     # fc2 (1x1 conv, no bias)
    return x + out


if __name__ == "__main__":
    B, C, H, W = 2, 16, 16, 16        # in_dim == dim == 16 -> conv1x1 is Identity
    Hd = 4 * C                        # Mlp hidden = mlp_ratio(=4) * in_features

    key = jax.random.PRNGKey(0)
    kx, k1, k2 = jax.random.split(key, 3)

    x = jax.random.normal(kx, (B, C, H, W), dtype=jnp.float32)

    params = {
        # LayerNormGeneral affine params (init: ones / zeros), shape (C,1,1) -> (C,)
        "g1": jnp.ones((C,), jnp.float32),
        "b1": jnp.zeros((C,), jnp.float32),
        "g2": jnp.ones((C,), jnp.float32),
        "b2": jnp.zeros((C,), jnp.float32),
        # 1x1 conv weights: torch (out, in, 1, 1) stored here transposed as (in, out)
        "w1": 0.05 * jax.random.normal(k1, (C, Hd), dtype=jnp.float32),
        "w2": 0.05 * jax.random.normal(k2, (Hd, C), dtype=jnp.float32),
        # StarReLU scale=1.0, bias=0.0 (module defaults)
        "sr": jnp.array([1.0, 0.0], dtype=jnp.float32),
    }

    y_kernel = jax.block_until_ready(metaformer_block(x, params))
    y_ref = jax.block_until_ready(ref_forward(x, params))

    # bf16 matmul operands (f32 accumulation) -> loosened tolerance vs f32 reference.
    np.testing.assert_allclose(np.asarray(y_kernel), np.asarray(y_ref),
                               rtol=2e-2, atol=2e-2)
    print("KERNEL_OK")
</pallas_src>

<mosaic_0001>
module attributes {stable_mosaic.version = 11 : i64} {
  func.func @_metaformer_kernel(%arg0: i32, %arg1: i32, %arg2: memref<1x16x256xf32, #tpu.memory_space<vmem>>, %arg3: memref<1x16x1xf32, #tpu.memory_space<vmem>>, %arg4: memref<1x16x1xf32, #tpu.memory_space<vmem>>, %arg5: memref<1x16x1xf32, #tpu.memory_space<vmem>>, %arg6: memref<1x16x1xf32, #tpu.memory_space<vmem>>, %arg7: memref<64x16xbf16, #tpu.memory_space<vmem>>, %arg8: memref<16x64xbf16, #tpu.memory_space<vmem>>, %arg9: memref<16x1xf32, #tpu.memory_space<vmem>>, %arg10: memref<1x16x256xf32, #tpu.memory_space<vmem>>) attributes {dimension_semantics = [#tpu.dimension_semantics<parallel>, #tpu.dimension_semantics<parallel>], iteration_bounds = array<i64: 2, 1>, scalar_prefetch = 0 : i64, scratch_operands = 0 : i64, tpu.core_type = #tpu.core_type<tc>, window_params = [{transform_indices = @transform_0, window_bounds = array<i64: 1, 16, 256>}, {transform_indices = @transform_1, window_bounds = array<i64: 1, 16, 1>}, {transform_indices = @transform_2, window_bounds = array<i64: 1, 16, 1>}, {transform_indices = @transform_3, window_bounds = array<i64: 1, 16, 1>}, {transform_indices = @transform_4, window_bounds = array<i64: 1, 16, 1>}, {pipeline_mode = #tpu.pipeline_mode<synchronous>, transform_indices = @transform_5, window_bounds = array<i64: 64, 16>}, {pipeline_mode = #tpu.pipeline_mode<synchronous>, transform_indices = @transform_6, window_bounds = array<i64: 16, 64>}, {pipeline_mode = #tpu.pipeline_mode<synchronous>, transform_indices = @transform_7, window_bounds = array<i64: 16, 1>}, {transform_indices = @transform_8, window_bounds = array<i64: 1, 16, 256>}]} {
    %c0 = arith.constant 0 : index
    %c0_0 = arith.constant 0 : index
    %c0_1 = arith.constant 0 : index
    %0 = vector.load %arg2[%c0, %c0_0, %c0_1] : memref<1x16x256xf32, #tpu.memory_space<vmem>>, vector<1x16x256xf32>
    %1 = vector.shape_cast %0 : vector<1x16x256xf32> to vector<16x256xf32>
    %c0_2 = arith.constant 0 : index
    %c0_3 = arith.constant 0 : index
    %c0_4 = arith.constant 0 : index
    %2 = vector.load %arg3[%c0_2, %c0_3, %c0_4] : memref<1x16x1xf32, #tpu.memory_space<vmem>>, vector<1x16x1xf32>
    %3 = vector.shape_cast %2 : vector<1x16x1xf32> to vector<16x1xf32>
    %c0_5 = arith.constant 0 : index
    %c0_6 = arith.constant 0 : index
    %c0_7 = arith.constant 0 : index
    %4 = vector.load %arg4[%c0_5, %c0_6, %c0_7] : memref<1x16x1xf32, #tpu.memory_space<vmem>>, vector<1x16x1xf32>
    %5 = vector.shape_cast %4 : vector<1x16x1xf32> to vector<16x1xf32>
    %c0_8 = arith.constant 0 : index
    %c0_9 = arith.constant 0 : index
    %c0_10 = arith.constant 0 : index
    %6 = vector.load %arg5[%c0_8, %c0_9, %c0_10] : memref<1x16x1xf32, #tpu.memory_space<vmem>>, vector<1x16x1xf32>
    %7 = vector.shape_cast %6 : vector<1x16x1xf32> to vector<16x1xf32>
    %c0_11 = arith.constant 0 : index
    %c0_12 = arith.constant 0 : index
    %c0_13 = arith.constant 0 : index
    %8 = vector.load %arg6[%c0_11, %c0_12, %c0_13] : memref<1x16x1xf32, #tpu.memory_space<vmem>>, vector<1x16x1xf32>
    %9 = vector.shape_cast %8 : vector<1x16x1xf32> to vector<16x1xf32>
    %c0_14 = arith.constant 0 : index
    %c0_15 = arith.constant 0 : index
    %10 = vector.load %arg9[%c0_14, %c0_15] : memref<16x1xf32, #tpu.memory_space<vmem>>, vector<16x1xf32>
    %11 = vector.broadcast %3 : vector<16x1xf32> to vector<16x256xf32>
    %12 = arith.mulf %11, %1 : vector<16x256xf32>
    %13 = vector.broadcast %5 : vector<16x1xf32> to vector<16x256xf32>
    %14 = arith.addf %12, %13 : vector<16x256xf32>
    %15 = vector.broadcast %7 : vector<16x1xf32> to vector<16x256xf32>
    %16 = arith.mulf %15, %1 : vector<16x256xf32>
    %17 = vector.broadcast %9 : vector<16x1xf32> to vector<16x256xf32>
    %18 = arith.addf %16, %17 : vector<16x256xf32>
    %19 = arith.truncf %18 : vector<16x256xf32> to vector<16x256xbf16>
    %c0_16 = arith.constant 0 : index
    %c0_17 = arith.constant 0 : index
    %20 = vector.load %arg7[%c0_16, %c0_17] : memref<64x16xbf16, #tpu.memory_space<vmem>>, vector<64x16xbf16>
    %cst = arith.constant dense<0.000000e+00> : vector<64x256xf32>
    %21 = tpu.matmul %20, %19, %cst {dimension_numbers = #tpu.dot_dimension_numbers<[1], [0], [0], [1], [0, 0, 1, 1], [], []>} : vector<64x16xbf16>, vector<16x256xbf16>, vector<64x256xf32> -> vector<64x256xf32>
    %cst_18 = arith.constant 0.000000e+00 : f32
    %22 = vector.broadcast %cst_18 : f32 to vector<64x256xf32>
    %23 = arith.maximumf %21, %22 : vector<64x256xf32>
    %24 = arith.mulf %23, %23 : vector<64x256xf32>
    %25 = arith.truncf %24 : vector<64x256xf32> to vector<64x256xbf16>
    %c0_19 = arith.constant 0 : index
    %c0_20 = arith.constant 0 : index
    %26 = vector.load %arg8[%c0_19, %c0_20] : memref<16x64xbf16, #tpu.memory_space<vmem>>, vector<16x64xbf16>
    %cst_21 = arith.constant dense<0.000000e+00> : vector<16x256xf32>
    %27 = tpu.matmul %26, %25, %cst_21 {dimension_numbers = #tpu.dot_dimension_numbers<[1], [0], [0], [1], [0, 0, 1, 1], [], []>} : vector<16x64xbf16>, vector<64x256xbf16>, vector<16x256xf32> -> vector<16x256xf32>
    %28 = arith.addf %14, %27 : vector<16x256xf32>
    %29 = vector.broadcast %10 : vector<16x1xf32> to vector<16x256xf32>
    %30 = arith.addf %28, %29 : vector<16x256xf32>
    %c0_22 = arith.constant 0 : index
    %c0_23 = arith.constant 0 : index
    %c0_24 = arith.constant 0 : index
    %31 = vector.load %arg10[%c0_22, %c0_23, %c0_24] : memref<1x16x256xf32, #tpu.memory_space<vmem>>, vector<1x16x256xf32>
    %32 = vector.shape_cast %31 : vector<1x16x256xf32> to vector<16x256xf32>
    %33 = vector.shape_cast %30 : vector<16x256xf32> to vector<1x16x256xf32>
    tpu.vector_store %arg10[%c0_22, %c0_23, %c0_24], %33 {strides = array<i32>} : memref<1x16x256xf32, #tpu.memory_space<vmem>>, vector<1x16x256xf32>,
    return
  }
  func.func @transform_0(%arg0: i32, %arg1: i32) -> (i32, i32, i32) {
    %c0_i32 = arith.constant 0 : i32
    %c0_i32_0 = arith.constant 0 : i32
    return %arg0, %c0_i32, %arg1 : i32, i32, i32
  }
  func.func @transform_1(%arg0: i32, %arg1: i32) -> (i32, i32, i32) {
    %c0_i32 = arith.constant 0 : i32
    %c0_i32_0 = arith.constant 0 : i32
    %c0_i32_1 = arith.constant 0 : i32
    return %arg0, %c0_i32, %c0_i32_0 : i32, i32, i32
  }
  func.func @transform_2(%arg0: i32, %arg1: i32) -> (i32, i32, i32) {
    %c0_i32 = arith.constant 0 : i32
    %c0_i32_0 = arith.constant 0 : i32
    %c0_i32_1 = arith.constant 0 : i32
    return %arg0, %c0_i32, %c0_i32_0 : i32, i32, i32
  }
  func.func @transform_3(%arg0: i32, %arg1: i32) -> (i32, i32, i32) {
    %c0_i32 = arith.constant 0 : i32
    %c0_i32_0 = arith.constant 0 : i32
    %c0_i32_1 = arith.constant 0 : i32
    return %arg0, %c0_i32, %c0_i32_0 : i32, i32, i32
  }
  func.func @transform_4(%arg0: i32, %arg1: i32) -> (i32, i32, i32) {
    %c0_i32 = arith.constant 0 : i32
    %c0_i32_0 = arith.constant 0 : i32
    %c0_i32_1 = arith.constant 0 : i32
    return %arg0, %c0_i32, %c0_i32_0 : i32, i32, i32
  }
  func.func @transform_5(%arg0: i32, %arg1: i32) -> (i32, i32) {
    %c0_i32 = arith.constant 0 : i32
    %c0_i32_0 = arith.constant 0 : i32
    %c0_i32_1 = arith.constant 0 : i32
    return %c0_i32, %c0_i32_0 : i32, i32
  }
  func.func @transform_6(%arg0: i32, %arg1: i32) -> (i32, i32) {
    %c0_i32 = arith.constant 0 : i32
    %c0_i32_0 = arith.constant 0 : i32
    %c0_i32_1 = arith.constant 0 : i32
    return %c0_i32, %c0_i32_0 : i32, i32
  }
  func.func @transform_7(%arg0: i32, %arg1: i32) -> (i32, i32) {
    %c0_i32 = arith.constant 0 : i32
    %c0_i32_0 = arith.constant 0 : i32
    %c0_i32_1 = arith.constant 0 : i32
    return %c0_i32, %c0_i32_0 : i32, i32
  }
  func.func @transform_8(%arg0: i32, %arg1: i32) -> (i32, i32, i32) {
    %c0_i32 = arith.constant 0 : i32
    %c0_i32_0 = arith.constant 0 : i32
    return %arg0, %c0_i32, %arg1 : i32, i32, i32
  }
}

</mosaic_0001>

<llo_original>
// kernel: tpu_custom_call.1
$region0: #{tpu_custom_call.1}
  #allocation0 [shape = 'u32[]', space=smem, size = 0x4, offset = 0x4, fixed_abs, tag = 'smem constant byte address 0x4 - core index']
  #allocation1 [shape = 'u32[144,128]{1,0:T(1,128)}', space=vmem, size = 0x12000, scoped, tag = 'internal scratch']
  %s0 = inlined_call_operand.vmem [shape: f32[2,16,256], index: 0, kind: input, shape index: {}]
  %s1 = inlined_call_operand.vmem [shape: f32[2,16,1], index: 1, kind: input, shape index: {}]
  %s2 = inlined_call_operand.vmem [shape: f32[2,16,1], index: 2, kind: input, shape index: {}]
  %s3 = inlined_call_operand.vmem [shape: f32[2,16,1], index: 3, kind: input, shape index: {}]
  %s4 = inlined_call_operand.vmem [shape: f32[2,16,1], index: 4, kind: input, shape index: {}]
  %s5 = inlined_call_operand.vmem [shape: bf16[64,16], index: 5, kind: input, shape index: {}]
  %s6 = inlined_call_operand.vmem [shape: bf16[16,64], index: 6, kind: input, shape index: {}]
  %s7 = inlined_call_operand.vmem [shape: f32[16,1], index: 7, kind: input, shape index: {}]
  %s8 = inlined_call_operand.hbm [shape: f32[2,16,256], index: 8, kind: output, shape index: {}]
  %s9 = sld [smem:[#allocation0]]
  $region65: #{tpu_custom_call.1} parent=0
    _
  %s11 = ssub.s32 1, %s9
  %s12 = scalar_select 0, %s11, %s9
  $region1: #{tpu_custom_call.1} parent=0
    #allocation2 [shape = 'u8[32768]{0}', space=vmem, size = 0x8000, scoped, tag = 'output window, operand 0']
    #allocation3 [shape = 's32[2]{0}', space=sflag, size = 0x8, scoped, tag = 'scoped memory for tpu_custom_call.1']
    %13 = vsyncpa [#allocation3], 0
    %s14 = scalar_lea.sflag [#allocation3], 1
    %15 = vsyncpa %s14, 0
    loop: start=0, step=1, limit=4
    $region2: #{tpu_custom_call.1} parent=1 // loop_pre_header
      _
    $region3: #{tpu_custom_call.1} parent=1 // loop_header
      %s17 = sphi 0, %s21
      %p18 = scmp.ge.s32.totalorder %s17, 4
      %s24 = sphi 0, %s36
      %s25 = sphi 0, %s32
      %s26 = sphi 0, %s24
      %s27 = sphi 0, %s25
      %s28 = sphi 0, %s26
      %s29 = sphi 0, %s27
      %s41 = sphi 0, %s43
      %s44 = sphi 0, %s41
      %s45 = sphi 0, %s44
      %s61 = sphi 0, %s45
      %s67 = sphi 0, %s69
      %s70 = sphi 0, %s67
      %s71 = sphi 0, %s70
      %s87 = sphi 0, %s71
      %s93 = sphi 0, %s95
      %s96 = sphi 0, %s93
      %s97 = sphi 0, %s96
      %s113 = sphi 0, %s97
      %s119 = sphi 0, %s121
      %s122 = sphi 0, %s119
      %s123 = sphi 0, %s122
      %s139 = sphi 0, %s123
      %s145 = sphi 0, %s147
      %s148 = sphi 0, %s145
      %s149 = sphi 0, %s148
      %s165 = sphi 0, %s149
      %s169 = sphi 0, %s169
      %s171 = sphi 0, %s169
      %s172 = sphi 0, %s171
      %s186 = sphi 0, %s172
      %s190 = sphi 0, %s190
      %s192 = sphi 0, %s190
      %s193 = sphi 0, %s192
      %s207 = sphi 0, %s193
      %s211 = sphi 0, %s211
      %s213 = sphi 0, %s211
      %s214 = sphi 0, %s213
      %s228 = sphi 0, %s214
      %s236 = sphi 0, %s238
      %s239 = sphi 0, %s236
      %s240 = sphi 0, %s239
      %s256 = sphi 0, %s240
    $region4: #{tpu_custom_call.1} parent=1 // loop_header_branch
      %20 = sbr.rel (%p18) target = $region8
    $region5: #{tpu_custom_call.1} parent=1 // loop_body
      %s22 = ssub.s32 %s17, 1
      %s23 = ssub.s32 %s17, 2
      %s30 = sadd.s32 1, %s25
      %p31 = scmp.ge.s32.totalorder %s30, 1
      %s32 = scalar_select %p31, 0, %s30
      %s33 = sadd.s32 1, %s24
      %s34 = scalar_select %p31, %s33, %s24
      %p35 = scmp.ge.s32.totalorder %s34, 2
      %s36 = scalar_select %p35, 0, %s34
      %s37 = ssub.s32 %s24, %s36
      %s38 = ssub.s32 %s25, %s32
      %s39 = sor.u32 %s37, %s38
      %p40 = scmp.eq.s32.totalorder %s39, 0
      %s42 = sadd.s32 %s41, 1
      %s43 = scalar_select %p40, %s41, %s42
      %p46 = pneg %p40
      %p47 = scmp.eq.s32.totalorder %s17, 1
      %p48 = por %p46, %p47
      %p49 = scmp.ne.s32.totalorder %s41, %s44
      %p50 = scmp.eq.s32.totalorder %s17, 0
      %p51 = por %p49, %p50
      %p52 = scmp.ne.s32.totalorder %s41, %s44
      %p53 = scmp.eq.s32.totalorder %s22, 1
      %p54 = por %p52, %p53
      %p55 = scmp.ne.s32.totalorder %s44, %s45
      %p56 = scmp.eq.s32.totalorder %s22, 0
      %p57 = por %p55, %p56
      %p58 = scmp.ne.s32.totalorder %s44, %s45
      %p59 = scmp.eq.s32.totalorder %s23, 1
      %p60 = por %p58, %p59
      %p62 = scmp.ne.s32.totalorder %s45, %s61
      %p63 = scmp.eq.s32.totalorder %s23, 0
      %p64 = por %p62, %p63
      %s65 = ssub.s32 %s24, %s36
      %p66 = scmp.eq.s32.totalorder %s65, 0
      %s68 = sadd.s32 %s67, 1
      %s69 = scalar_select %p66, %s67, %s68
      %p72 = pneg %p66
      %p73 = scmp.eq.s32.totalorder %s17, 1
      %p74 = por %p72, %p73
      %p75 = scmp.ne.s32.totalorder %s67, %s70
      %p76 = scmp.eq.s32.totalorder %s17, 0
      %p77 = por %p75, %p76
      %p78 = scmp.ne.s32.totalorder %s67, %s70
      %p79 = scmp.eq.s32.totalorder %s22, 1
      %p80 = por %p78, %p79
      %p81 = scmp.ne.s32.totalorder %s70, %s71
      %p82 = scmp.eq.s32.totalorder %s22, 0
      %p83 = por %p81, %p82
      %p84 = scmp.ne.s32.totalorder %s70, %s71
      %p85 = scmp.eq.s32.totalorder %s23, 1
      %p86 = por %p84, %p85
      %p88 = scmp.ne.s32.totalorder %s71, %s87
      %p89 = scmp.eq.s32.totalorder %s23, 0
      %p90 = por %p88, %p89
      %s91 = ssub.s32 %s24, %s36
      %p92 = scmp.eq.s32.totalorder %s91, 0
      %s94 = sadd.s32 %s93, 1
      %s95 = scalar_select %p92, %s93, %s94
      %p98 = pneg %p92
      %p99 = scmp.eq.s32.totalorder %s17, 1
      %p100 = por %p98, %p99
      %p101 = scmp.ne.s32.totalorder %s93, %s96
      %p102 = scmp.eq.s32.totalorder %s17, 0
      %p103 = por %p101, %p102
      %p104 = scmp.ne.s32.totalorder %s93, %s96
      %p105 = scmp.eq.s32.totalorder %s22, 1
      %p106 = por %p104, %p105
      %p107 = scmp.ne.s32.totalorder %s96, %s97
      %p108 = scmp.eq.s32.totalorder %s22, 0
      %p109 = por %p107, %p108
      %p110 = scmp.ne.s32.totalorder %s96, %s97
      %p111 = scmp.eq.s32.totalorder %s23, 1
      %p112 = por %p110, %p111
      %p114 = scmp.ne.s32.totalorder %s97, %s113
      %p115 = scmp.eq.s32.totalorder %s23, 0
      %p116 = por %p114, %p115
      %s117 = ssub.s32 %s24, %s36
      %p118 = scmp.eq.s32.totalorder %s117, 0
      %s120 = sadd.s32 %s119, 1
      %s121 = scalar_select %p118, %s119, %s120
      %p124 = pneg %p118
      %p125 = scmp.eq.s32.totalorder %s17, 1
      %p126 = por %p124, %p125
      %p127 = scmp.ne.s32.totalorder %s119, %s122
      %p128 = scmp.eq.s32.totalorder %s17, 0
      %p129 = por %p127, %p128
      %p130 = scmp.ne.s32.totalorder %s119, %s122
      %p131 = scmp.eq.s32.totalorder %s22, 1
      %p132 = por %p130, %p131
      %p133 = scmp.ne.s32.totalorder %s122, %s123
      %p134 = scmp.eq.s32.totalorder %s22, 0
      %p135 = por %p133, %p134
      %p136 = scmp.ne.s32.totalorder %s122, %s123
      %p137 = scmp.eq.s32.totalorder %s23, 1
      %p138 = por %p136, %p137
      %p140 = scmp.ne.s32.totalorder %s123, %s139
      %p141 = scmp.eq.s32.totalorder %s23, 0
      %p142 = por %p140, %p141
      %s143 = ssub.s32 %s24, %s36
      %p144 = scmp.eq.s32.totalorder %s143, 0
      %s146 = sadd.s32 %s145, 1
      %s147 = scalar_select %p144, %s145, %s146
      %p150 = pneg %p144
      %p151 = scmp.eq.s32.totalorder %s17, 1
      %p152 = por %p150, %p151
      %p153 = scmp.ne.s32.totalorder %s145, %s148
      %p154 = scmp.eq.s32.totalorder %s17, 0
      %p155 = por %p153, %p154
      %p156 = scmp.ne.s32.totalorder %s145, %s148
      %p157 = scmp.eq.s32.totalorder %s22, 1
      %p158 = por %p156, %p157
      %p159 = scmp.ne.s32.totalorder %s148, %s149
      %p160 = scmp.eq.s32.totalorder %s22, 0
      %p161 = por %p159, %p160
      %p162 = scmp.ne.s32.totalorder %s148, %s149
      %p163 = scmp.eq.s32.totalorder %s23, 1
      %p164 = por %p162, %p163
      %p166 = scmp.ne.s32.totalorder %s149, %s165
      %p167 = scmp.eq.s32.totalorder %s23, 0
      %p168 = por %p166, %p167
      %s170 = sadd.s32 %s169, 1
      %p173 = scmp.eq.s32.totalorder %s17, 1
      %p174 = scmp.ne.s32.totalorder %s169, %s171
      %p175 = scmp.eq.s32.totalorder %s17, 0
      %p176 = por %p174, %p175
      %p177 = scmp.ne.s32.totalorder %s169, %s171
      %p178 = scmp.eq.s32.totalorder %s22, 1
      %p179 = por %p177, %p178
      %p180 = scmp.ne.s32.totalorder %s171, %s172
      %p181 = scmp.eq.s32.totalorder %s22, 0
      %p182 = por %p180, %p181
      %p183 = scmp.ne.s32.totalorder %s171, %s172
      %p184 = scmp.eq.s32.totalorder %s23, 1
      %p185 = por %p183, %p184
      %p187 = scmp.ne.s32.totalorder %s172, %s186
      %p188 = scmp.eq.s32.totalorder %s23, 0
      %p189 = por %p187, %p188
      %s191 = sadd.s32 %s190, 1
      %p194 = scmp.eq.s32.totalorder %s17, 1
      %p195 = scmp.ne.s32.totalorder %s190, %s192
      %p196 = scmp.eq.s32.totalorder %s17, 0
      %p197 = por %p195, %p196
      %p198 = scmp.ne.s32.totalorder %s190, %s192
      %p199 = scmp.eq.s32.totalorder %s22, 1
      %p200 = por %p198, %p199
      %p201 = scmp.ne.s32.totalorder %s192, %s193
      %p202 = scmp.eq.s32.totalorder %s22, 0
      %p203 = por %p201, %p202
      %p204 = scmp.ne.s32.totalorder %s192, %s193
      %p205 = scmp.eq.s32.totalorder %s23, 1
      %p206 = por %p204, %p205
      %p208 = scmp.ne.s32.totalorder %s193, %s207
      %p209 = scmp.eq.s32.totalorder %s23, 0
      %p210 = por %p208, %p209
      %s212 = sadd.s32 %s211, 1
      %p215 = scmp.eq.s32.totalorder %s17, 1
      %p216 = scmp.ne.s32.totalorder %s211, %s213
      %p217 = scmp.eq.s32.totalorder %s17, 0
      %p218 = por %p216, %p217
      %p219 = scmp.ne.s32.totalorder %s211, %s213
      %p220 = scmp.eq.s32.totalorder %s22, 1
      %p221 = por %p219, %p220
      %p222 = scmp.ne.s32.totalorder %s213, %s214
      %p223 = scmp.eq.s32.totalorder %s22, 0
      %p224 = por %p222, %p223
      %p225 = scmp.ne.s32.totalorder %s213, %s214
      %p226 = scmp.eq.s32.totalorder %s23, 1
      %p227 = por %p225, %p226
      %p229 = scmp.ne.s32.totalorder %s214, %s228
      %p230 = scmp.eq.s32.totalorder %s23, 0
      %p231 = por %p229, %p230
      %s232 = ssub.s32 %s24, %s36
      %s233 = ssub.s32 %s25, %s32
      %s234 = sor.u32 %s232, %s233
      %p235 = scmp.eq.s32.totalorder %s234, 0
      %s237 = sadd.s32 %s236, 1
      %s238 = scalar_select %p235, %s236, %s237
      %p241 = pneg %p235
      %p242 = scmp.eq.s32.totalorder %s17, 1
      %p243 = por %p241, %p242
      %p244 = scmp.ne.s32.totalorder %s236, %s239
      %p245 = scmp.eq.s32.totalorder %s17, 0
      %p246 = por %p244, %p245
      %p247 = scmp.ne.s32.totalorder %s236, %s239
      %p248 = scmp.eq.s32.totalorder %s22, 1
      %p249 = por %p247, %p248
      %p250 = scmp.ne.s32.totalorder %s239, %s240
      %p251 = scmp.eq.s32.totalorder %s22, 0
      %p252 = por %p250, %p251
      %p253 = scmp.ne.s32.totalorder %s239, %s240
      %p254 = scmp.eq.s32.totalorder %s23, 1
      %p255 = por %p253, %p254
      %p257 = scmp.ne.s32.totalorder %s240, %s256
      %p258 = scmp.eq.s32.totalorder %s23, 0
      %p259 = por %p257, %p258
      %p260 = scmp.le.s32.totalorder 1, %s17
      %p261 = scmp.lt.s32.totalorder %s17, 3
      %p262 = pnand %p260, %p261
      %p263 = pneg %p262
      // Predicated region
      $region9: #{tpu_custom_call.1} parent=5 // pred_check
        _
      $region10: #{tpu_custom_call.1} parent=5 // pred_check_branch
        %265 = sbr.rel (%p262) target = $region12
      $region11: #{tpu_custom_call.1} parent=5 // pred_region
        %s266 = ssub.s32 %s17, 1
        // Predicated region
        $region13: #{tpu_custom_call.1} parent=11 // pred_check
          %p267 = pneg %p182
        $region14: #{tpu_custom_call.1} parent=11 // pred_check_branch
          %269 = sbr.rel (%p267) target = $region16
        $region15: #{tpu_custom_call.1} parent=11 // pred_region
          _
        $region16: #{tpu_custom_call.1} parent=11 // pred_fallthru
          _
        // Predicated region
        $region17: #{tpu_custom_call.1} parent=11 // pred_check
          %p270 = pneg %p203
        $region18: #{tpu_custom_call.1} parent=11 // pred_check_branch
          %272 = sbr.rel (%p270) target = $region20
        $region19: #{tpu_custom_call.1} parent=11 // pred_region
          _
        $region20: #{tpu_custom_call.1} parent=11 // pred_fallthru
          _
        // Predicated region
        $region21: #{tpu_custom_call.1} parent=11 // pred_check
          %p273 = pneg %p224
        $region22: #{tpu_custom_call.1} parent=11 // pred_check_branch
          %275 = sbr.rel (%p273) target = $region24
        $region23: #{tpu_custom_call.1} parent=11 // pred_region
          _
        $region24: #{tpu_custom_call.1} parent=11 // pred_fallthru
          _
      $region12: #{tpu_custom_call.1} parent=5 // pred_fallthru
        _
      %p276 = scmp.lt.s32.totalorder %s17, 2
      // Predicated region
      $region25: #{tpu_custom_call.1} parent=5 // pred_check
        %p277 = pneg %p276
      $region26: #{tpu_custom_call.1} parent=5 // pred_check_branch
        %279 = sbr.rel (%p277) target = $region28
      $region27: #{tpu_custom_call.1} parent=5 // pred_region
        // Predicated region
        $region29: #{tpu_custom_call.1} parent=27 // pred_check
          %p280 = pneg %p51
        $region30: #{tpu_custom_call.1} parent=27 // pred_check_branch
          %282 = sbr.rel (%p280) target = $region32
        $region31: #{tpu_custom_call.1} parent=27 // pred_region
          %s283 = smul.u32 2, %s25
          %p284 = scmp.lt.s32.totalorder %s24, 1
          %s285 = scalar_select %p284, %s24, 1
          %p286 = scmp.lt.s32.totalorder %s283, 1
          %s287 = scalar_select %p286, %s283, 1
          %s288 = smul.addr %s285, 4
          %s289 = sadd.s32 %s287, %s288
          %s290 = smul.addr %s289, 8
          %s291 = scalar_lea.vmem %s0, %s290
          %s292 = smul.u32 2, %s25
        $region32: #{tpu_custom_call.1} parent=27 // pred_fallthru
          _
        // Predicated region
        $region33: #{tpu_custom_call.1} parent=27 // pred_check
          %p293 = pneg %p77
        $region34: #{tpu_custom_call.1} parent=27 // pred_check_branch
          %295 = sbr.rel (%p293) target = $region36
        $region35: #{tpu_custom_call.1} parent=27 // pred_region
          %p296 = scmp.lt.s32.totalorder %s24, 1
          %s297 = scalar_select %p296, %s24, 1
          %s298 = smul.addr %s297, 2
          %s299 = smul.addr %s298, 8
          %s300 = scalar_lea.vmem %s1, %s299
        $region36: #{tpu_custom_call.1} parent=27 // pred_fallthru
          _
        // Predicated region
        $region37: #{tpu_custom_call.1} parent=27 // pred_check
          %p301 = pneg %p103
        $region38: #{tpu_custom_call.1} parent=27 // pred_check_branch
          %303 = sbr.rel (%p301) target = $region40
        $region39: #{tpu_custom_call.1} parent=27 // pred_region
          %p304 = scmp.lt.s32.totalorder %s24, 1
          %s305 = scalar_select %p304, %s24, 1
          %s306 = smul.addr %s305, 2
          %s307 = smul.addr %s306, 8
          %s308 = scalar_lea.vmem %s2, %s307
        $region40: #{tpu_custom_call.1} parent=27 // pred_fallthru
          _
        // Predicated region
        $region41: #{tpu_custom_call.1} parent=27 // pred_check
          %p309 = pneg %p129
        $region42: #{tpu_custom_call.1} parent=27 // pred_check_branch
          %311 = sbr.rel (%p309) target = $region44
        $region43: #{tpu_custom_call.1} parent=27 // pred_region
          %p312 = scmp.lt.s32.totalorder %s24, 1
          %s313 = scalar_select %p312, %s24, 1
          %s314 = smul.addr %s313, 2
          %s315 = smul.addr %s314, 8
          %s316 = scalar_lea.vmem %s3, %s315
        $region44: #{tpu_custom_call.1} parent=27 // pred_fallthru
          _
        // Predicated region
        $region45: #{tpu_custom_call.1} parent=27 // pred_check
          %p317 = pneg %p155
        $region46: #{tpu_custom_call.1} parent=27 // pred_check_branch
          %319 = sbr.rel (%p317) target = $region48
        $region47: #{tpu_custom_call.1} parent=27 // pred_region
          %p320 = scmp.lt.s32.totalorder %s24, 1
          %s321 = scalar_select %p320, %s24, 1
          %s322 = smul.addr %s321, 2
          %s323 = smul.addr %s322, 8
          %s324 = scalar_lea.vmem %s4, %s323
        $region48: #{tpu_custom_call.1} parent=27 // pred_fallthru
          _
      $region28: #{tpu_custom_call.1} parent=5 // pred_fallthru
        _
      %p325 = scmp.le.s32.totalorder 1, %s17
      %p326 = scmp.lt.s32.totalorder %s17, 3
      %p327 = pnand %p325, %p326
      %p328 = pneg %p327
      // Predicated region
      $region49: #{tpu_custom_call.1} parent=5 // pred_check
        _
      $region50: #{tpu_custom_call.1} parent=5 // pred_check_branch
        %330 = sbr.rel (%p327) target = $region52
      $region51: #{tpu_custom_call.1} parent=5 // pred_region
        %s331 = ssub.s32 %s17, 1
        %s332 = smul.u32 2, %s27
        %p333 = scmp.lt.s32.totalorder %s26, 1
        %s334 = scalar_select %p333, %s26, 1
        %p335 = scmp.lt.s32.totalorder %s332, 1
        %s336 = scalar_select %p335, %s332, 1
        %s337 = smul.addr %s334, 4
        %s338 = sadd.s32 %s336, %s337
        %s339 = smul.addr %s338, 8
        %s340 = scalar_lea.vmem %s0, %s339
        %p341 = pneg %p57
        %p342 = pneg %p54
        %p343 = scmp.lt.s32.totalorder %s26, 1
        %s344 = scalar_select %p343, %s26, 1
        %s345 = smul.addr %s344, 2
        %s346 = smul.addr %s345, 8
        %s347 = scalar_lea.vmem %s1, %s346
        %p348 = pneg %p83
        %p349 = pneg %p80
        %p350 = scmp.lt.s32.totalorder %s26, 1
        %s351 = scalar_select %p350, %s26, 1
        %s352 = smul.addr %s351, 2
        %s353 = smul.addr %s352, 8
        %s354 = scalar_lea.vmem %s2, %s353
        %p355 = pneg %p109
        %p356 = pneg %p106
        %p357 = scmp.lt.s32.totalorder %s26, 1
        %s358 = scalar_select %p357, %s26, 1
        %s359 = smul.addr %s358, 2
        %s360 = smul.addr %s359, 8
        %s361 = scalar_lea.vmem %s3, %s360
        %p362 = pneg %p135
        %p363 = pneg %p132
        %p364 = scmp.lt.s32.totalorder %s26, 1
        %s365 = scalar_select %p364, %s26, 1
        %s366 = smul.addr %s365, 2
        %s367 = smul.addr %s366, 8
        %s368 = scalar_lea.vmem %s4, %s367
        %p369 = pneg %p161
        %p370 = pneg %p158
        %p371 = pneg %p182
        %p372 = pneg %p179
        %p373 = pneg %p203
        %p374 = pneg %p200
        %p375 = pneg %p224
        %p376 = pneg %p221
        %p377 = pneg %p252
        %p378 = pneg %p249
        %s379 = sand.u32 %s239, 1
        %s380 = scalar_lea.sflag [#allocation3], %s379
        %s381 = sand.u32 %s239, 1
        %s382 = smul.addr %s381, 32
        %s383 = scalar_lea.vmem [#allocation2], %s382
        %s384 = smul.u32 2, %s27
        %p385 = scmp.lt.s32.totalorder %s26, 1
        %s386 = scalar_select %p385, %s26, 1
        %p387 = scmp.lt.s32.totalorder %s384, 1
        %s388 = scalar_select %p387, %s384, 1
        %s389 = smul.addr %s386, 4
        %s390 = sadd.s32 %s388, %s389
        %s391 = smul.addr %s390, 8
        %s392 = scalar_lea.vmem %s0, %s391
        %s393 = smul.u32 2, %s27
        %p394 = scmp.lt.s32.totalorder %s26, 1
        %s395 = scalar_select %p394, %s26, 1
        %s396 = smul.addr %s395, 2
        %s397 = smul.addr %s396, 8
        %s398 = scalar_lea.vmem %s1, %s397
        %p399 = scmp.lt.s32.totalorder %s26, 1
        %s400 = scalar_select %p399, %s26, 1
        %s401 = smul.addr %s400, 2
        %s402 = smul.addr %s401, 8
        %s403 = scalar_lea.vmem %s2, %s402
        %p404 = scmp.lt.s32.totalorder %s26, 1
        %s405 = scalar_select %p404, %s26, 1
        %s406 = smul.addr %s405, 2
        %s407 = smul.addr %s406, 8
        %s408 = scalar_lea.vmem %s3, %s407
        %p409 = scmp.lt.s32.totalorder %s26, 1
        %s410 = scalar_select %p409, %s26, 1
        %s411 = smul.addr %s410, 2
        %s412 = smul.addr %s411, 8
        %s413 = scalar_lea.vmem %s4, %s412
        %s414 = smul.u32 2, %s27
        %v416 = vld [vmem:[%s392] sm:$0xff]
        %v417 = vld [vmem:[%s392 + $0x8] sm:$0xff]
        %v418 = vld [vmem:[%s392 + $0x10] sm:$0xff]
        %v419 = vld [vmem:[%s392 + $0x18] sm:$0xff]
        %v420 = vld [vmem:[%s398] sm:$0xff]
        %v421 = vld [vmem:[%s398 + $0x8] sm:$0xff]
        %v422 = vld [vmem:[%s403] sm:$0xff]
        %v423 = vld [vmem:[%s403 + $0x8] sm:$0xff]
        %v424 = vld [vmem:[%s408] sm:$0xff]
        %v425 = vld [vmem:[%s408 + $0x8] sm:$0xff]
        %v426 = vld [vmem:[%s413] sm:$0xff]
        %v427 = vld [vmem:[%s413 + $0x8] sm:$0xff]
        %v428 = vld [vmem:[%s7] sm:$0xff]
        %v429 = vld [vmem:[%s7 + $0x8] sm:$0xff]
        %431 = vset.pattern.permute.xlu0 0
        %432 = vperm.xlu0 %431, %v420
        %v433 = vpop.permute.xlu0 %432
        %436 = vset.pattern.permute.xlu0 0
        %437 = vperm.xlu0 %436, %v421
        %v438 = vpop.permute.xlu0 %437
        %v440 = vmul.f32 %v433, %v416
        %v441 = vmul.f32 %v433, %v417
        %v442 = vmul.f32 %v438, %v418
        %v443 = vmul.f32 %v438, %v419
        %445 = vset.pattern.permute.xlu0 0
        %446 = vperm.xlu0 %445, %v422
        %v447 = vpop.permute.xlu0 %446
        %450 = vset.pattern.permute.xlu0 0
        %451 = vperm.xlu0 %450, %v423
        %v452 = vpop.permute.xlu0 %451
        %v454 = vadd.f32 %v440, %v447
        %v455 = vadd.f32 %v441, %v447
        %v456 = vadd.f32 %v442, %v452
        %v457 = vadd.f32 %v443, %v452
        %459 = vset.pattern.permute.xlu0 0
        %460 = vperm.xlu0 %459, %v424
        %v461 = vpop.permute.xlu0 %460
        %464 = vset.pattern.permute.xlu0 0
        %465 = vperm.xlu0 %464, %v425
        %v466 = vpop.permute.xlu0 %465
        %v468 = vmul.f32 %v461, %v416
        %v469 = vmul.f32 %v461, %v417
        %v470 = vmul.f32 %v466, %v418
        %v471 = vmul.f32 %v466, %v419
        %473 = vset.pattern.permute.xlu0 0
        %474 = vperm.xlu0 %473, %v426
        %v475 = vpop.permute.xlu0 %474
        %478 = vset.pattern.permute.xlu0 0
        %479 = vperm.xlu0 %478, %v427
        %v480 = vpop.permute.xlu0 %479
        %v482 = vadd.f32 %v468, %v475
        %v483 = vadd.f32 %v469, %v475
        %v484 = vadd.f32 %v470, %v480
        %v485 = vadd.f32 %v471, %v480
        %v486 = vpack.c.bf16 %v484, %v482
        %v487 = vpack.c.bf16 %v485, %v483
        %v488 = vld [vmem:[%s5] sm:$0xf]
        %v489 = vld [vmem:[%s5 + $0x4] sm:$0xf]
        %v490 = vld [vmem:[%s5 + $0x8] sm:$0xf]
        %v491 = vld [vmem:[%s5 + $0xc] sm:$0xf]
        %v492 = vld [vmem:[%s5 + $0x10] sm:$0xf]
        %v493 = vld [vmem:[%s5 + $0x14] sm:$0xf]
        %v494 = vld [vmem:[%s5 + $0x18] sm:$0xf]
        %v495 = vld [vmem:[%s5 + $0x1c] sm:$0xf]
        %v504 = vunpack.c.l.b16 %v488
        %v505 = vunpack.c.l.b16 %v489
        %v506 = vunpack.c.l.b16 %v490
        %v507 = vunpack.c.l.b16 %v491
        %v508 = vunpack.c.l.b16 %v492
        %v509 = vunpack.c.l.b16 %v493
        %v510 = vunpack.c.l.b16 %v494
        %v511 = vunpack.c.l.b16 %v495
        %v512 = vpack.c.b16 %v505, %v504
        %v513 = vpack.c.b16 %v507, %v506
        %v514 = vpack.c.b16 %v509, %v508
        %v515 = vpack.c.b16 %v511, %v510
        %vm516 = vcmask 130048
        %v518 = vsel %vm516, %v512, 0
        %v521 = vsel %vm516, %v513, 0
        %v524 = vsel %vm516, %v514, 0
        %v527 = vsel %vm516, %v515, 0
        %529 = vmatprep.subr.bf16.mxu0 %v487
        %530 = vmatpush1.bf16.msra.mxu0 %v486
        %531 = vmatprep.subr.bf16.mxu0 0
        %532 = vmatpush1.bf16.msra.mxu0 0
        %533 = vmatprep.subr.bf16.mxu0 0
        %534 = vmatpush1.bf16.msra.mxu0 0
        %535 = vmatprep.subr.bf16.mxu0 0
        %536 = vmatpush1.bf16.msra.mxu0 0
        %537 = vmatprep.subr.bf16.mxu0 0
        %538 = vmatpush1.bf16.msra.mxu0 0
        %539 = vmatprep.subr.bf16.mxu0 0
        %540 = vmatpush1.bf16.msra.mxu0 0
        %541 = vmatprep.subr.bf16.mxu0 0
        %542 = vmatpush1.bf16.msra.mxu0 0
        %543 = vmatprep.subr.bf16.mxu0 0
        %544 = vmatpush1.bf16.msra.mxu0 0
        %545 = vmatprep.subr.bf16.mxu0 0
        %546 = vmatpush1.bf16.msra.mxu0 0
        %547 = vmatprep.subr.bf16.mxu0 0
        %548 = vmatpush1.bf16.msra.mxu0 0
        %549 = vmatprep.subr.bf16.mxu0 0
        %550 = vmatpush1.bf16.msra.mxu0 0
        %551 = vmatprep.subr.bf16.mxu0 0
        %552 = vmatpush1.bf16.msra.mxu0 0
        %553 = vmatprep.subr.bf16.mxu0 0
        %554 = vmatpush1.bf16.msra.mxu0 0
        %555 = vmatprep.subr.bf16.mxu0 0
        %556 = vmatpush1.bf16.msra.mxu0 0
        %557 = vmatprep.subr.bf16.mxu0 0
        %558 = vmatpush1.bf16.msra.mxu0 0
        %559 = vmatprep.subr.bf16.mxu0 0
        %560 = vmatpush1.bf16.msra.mxu0 0
        %561 = vmatprep.mubr.bf16.mxu0 0
        %562 = vmatmul.mubr.bf16.gmra.mrb[0].mxu0 %v518
        %v563 = vpop.f32.mrb[0].mxu0
        %v564 = vadd.f32 0.0, %v563
        %v565 = vpop.f32.mrb[0].mxu0
        %v566 = vadd.f32 0.0, %v565
        %v567 = vpop.f32.mrb[0].mxu0
        %v568 = vadd.f32 0.0, %v567
        %v569 = vpop.f32.mrb[0].mxu0
        %v570 = vadd.f32 0.0, %v569
        %571 = vmatprep.mubr.bf16.mxu0 0
        %572 = vmatmul.mubr.bf16.gmra.mrb[0].mxu0 %v521
        %v573 = vpop.f32.mrb[0].mxu0
        %v574 = vadd.f32 0.0, %v573
        %v575 = vpop.f32.mrb[0].mxu0
        %v576 = vadd.f32 0.0, %v575
        %v577 = vpop.f32.mrb[0].mxu0
        %v578 = vadd.f32 0.0, %v577
        %v579 = vpop.f32.mrb[0].mxu0
        %v580 = vadd.f32 0.0, %v579
        %581 = vmatprep.mubr.bf16.mxu0 0
        %582 = vmatmul.mubr.bf16.gmra.mrb[0].mxu0 %v524
        %v583 = vpop.f32.mrb[0].mxu0
        %v584 = vadd.f32 0.0, %v583
        %v585 = vpop.f32.mrb[0].mxu0
        %v586 = vadd.f32 0.0, %v585
        %v587 = vpop.f32.mrb[0].mxu0
        %v588 = vadd.f32 0.0, %v587
        %v589 = vpop.f32.mrb[0].mxu0
        %v590 = vadd.f32 0.0, %v589
        %591 = vmatprep.mubr.bf16.mxu0 0
        %592 = vmatmul.mubr.bf16.gmra.mrb[0].mxu0 %v527
        %v593 = vpop.f32.mrb[0].mxu0
        %v594 = vadd.f32 0.0, %v593
        %v595 = vpop.f32.mrb[0].mxu0
        %v596 = vadd.f32 0.0, %v595
        %v597 = vpop.f32.mrb[0].mxu0
        %v598 = vadd.f32 0.0, %v597
        %v599 = vpop.f32.mrb[0].mxu0
        %v600 = vadd.f32 0.0, %v599
        %601 = vdwg.mxu0
        %v602 = vmax.f32 %v564, 0.0
        %v603 = vmax.f32 %v566, 0.0
        %v604 = vmax.f32 %v568, 0.0
        %v605 = vmax.f32 %v570, 0.0
        %v606 = vmax.f32 %v574, 0.0
        %v607 = vmax.f32 %v576, 0.0
        %v608 = vmax.f32 %v578, 0.0
        %v609 = vmax.f32 %v580, 0.0
        %v610 = vmax.f32 %v584, 0.0
        %v611 = vmax.f32 %v586, 0.0
        %v612 = vmax.f32 %v588, 0.0
        %v613 = vmax.f32 %v590, 0.0
        %v614 = vmax.f32 %v594, 0.0
        %v615 = vmax.f32 %v596, 0.0
        %v616 = vmax.f32 %v598, 0.0
        %v617 = vmax.f32 %v600, 0.0
        %v618 = vmul.f32 %v602, %v602
        %v619 = vmul.f32 %v603, %v603
        %v620 = vmul.f32 %v604, %v604
        %v621 = vmul.f32 %v605, %v605
        %v622 = vmul.f32 %v606, %v606
        %v623 = vmul.f32 %v607, %v607
        %v624 = vmul.f32 %v608, %v608
        %v625 = vmul.f32 %v609, %v609
        %v626 = vmul.f32 %v610, %v610
        %v627 = vmul.f32 %v611, %v611
        %v628 = vmul.f32 %v612, %v612
        %v629 = vmul.f32 %v613, %v613
        %v630 = vmul.f32 %v614, %v614
        %v631 = vmul.f32 %v615, %v615
        %v632 = vmul.f32 %v616, %v616
        %v633 = vmul.f32 %v617, %v617
        %v634 = vpack.c.bf16 %v620, %v618
        %v635 = vpack.c.bf16 %v621, %v619
        %v636 = vpack.c.bf16 %v624, %v622
        %v637 = vpack.c.bf16 %v625, %v623
        %v638 = vpack.c.bf16 %v628, %v626
        %v639 = vpack.c.bf16 %v629, %v627
        %v640 = vpack.c.bf16 %v632, %v630
        %v641 = vpack.c.bf16 %v633, %v631
        %v642 = vld [vmem:[%s6] sm:$0xf]
        %v643 = vld [vmem:[%s6 + $0x4] sm:$0xf]
        %v646 = vunpack.c.l.b16 %v642
        %v647 = vunpack.c.l.b16 %v643
        %v648 = vpack.c.b16 %v647, %v646
        %vm649 = vcmask 523264
        %v651 = vsel %vm649, %v648, 0
        %653 = vmatprep.subr.bf16.mxu0 %v635
        %654 = vmatpush1.bf16.msra.mxu0 %v634
        %655 = vmatprep.subr.bf16.mxu0 %v637
        %656 = vmatpush1.bf16.msra.mxu0 %v636
        %657 = vmatprep.subr.bf16.mxu0 %v639
        %658 = vmatpush1.bf16.msra.mxu0 %v638
        %659 = vmatprep.subr.bf16.mxu0 %v641
        %660 = vmatpush1.bf16.msra.mxu0 %v640
        %661 = vmatprep.subr.bf16.mxu0 0
        %662 = vmatpush1.bf16.msra.mxu0 0
        %663 = vmatprep.subr.bf16.mxu0 0
        %664 = vmatpush1.bf16.msra.mxu0 0
        %665 = vmatprep.subr.bf16.mxu0 0
        %666 = vmatpush1.bf16.msra.mxu0 0
        %667 = vmatprep.subr.bf16.mxu0 0
        %668 = vmatpush1.bf16.msra.mxu0 0
        %669 = vmatprep.subr.bf16.mxu0 0
        %670 = vmatpush1.bf16.msra.mxu0 0
        %671 = vmatprep.subr.bf16.mxu0 0
        %672 = vmatpush1.bf16.msra.mxu0 0
        %673 = vmatprep.subr.bf16.mxu0 0
        %674 = vmatpush1.bf16.msra.mxu0 0
        %675 = vmatprep.subr.bf16.mxu0 0
        %676 = vmatpush1.bf16.msra.mxu0 0
        %677 = vmatprep.subr.bf16.mxu0 0
        %678 = vmatpush1.bf16.msra.mxu0 0
        %679 = vmatprep.subr.bf16.mxu0 0
        %680 = vmatpush1.bf16.msra.mxu0 0
        %681 = vmatprep.subr.bf16.mxu0 0
        %682 = vmatpush1.bf16.msra.mxu0 0
        %683 = vmatprep.subr.bf16.mxu0 0
        %684 = vmatpush1.bf16.msra.mxu0 0
        %685 = vmatprep.mubr.bf16.mxu0 0
        %686 = vmatmul.mubr.bf16.gmra.mrb[0].mxu0 %v651
        %v687 = vpop.f32.mrb[0].mxu0
        %v688 = vadd.f32 0.0, %v687
        %v689 = vpop.f32.mrb[0].mxu0
        %v690 = vadd.f32 0.0, %v689
        %v691 = vpop.f32.mrb[0].mxu0
        %v692 = vadd.f32 0.0, %v691
        %v693 = vpop.f32.mrb[0].mxu0
        %v694 = vadd.f32 0.0, %v693
        %695 = vdwg.mxu0
        %v696 = vadd.f32 %v454, %v688
        %v697 = vadd.f32 %v455, %v690
        %v698 = vadd.f32 %v456, %v692
        %v699 = vadd.f32 %v457, %v694
        %701 = vset.pattern.permute.xlu0 0
        %702 = vperm.xlu0 %701, %v428
        %v703 = vpop.permute.xlu0 %702
        %706 = vset.pattern.permute.xlu0 0
        %707 = vperm.xlu0 %706, %v429
        %v708 = vpop.permute.xlu0 %707
        %v710 = vadd.f32 %v696, %v703
        %v711 = vadd.f32 %v697, %v703
        %v712 = vadd.f32 %v698, %v708
        %v713 = vadd.f32 %v699, %v708
        %714 = vst [vmem:[%s383] sm:$0xff] %v710
        %715 = vst [vmem:[%s383 + $0x8] sm:$0xff] %v711
        %716 = vst [vmem:[%s383 + $0x10] sm:$0xff] %v712
        %717 = vst [vmem:[%s383 + $0x18] sm:$0xff] %v713
        %s718 = sand.u32 %s239, 1
        %s719 = scalar_lea.sflag [#allocation3], %s718
        %s720 = sand.u32 %s239, 1
        %s721 = smul.addr %s720, 32
        %s722 = scalar_lea.vmem [#allocation2], %s721
        // Predicated region
        $region53: #{tpu_custom_call.1} parent=51 // pred_check
          %p723 = pneg %p249
        $region54: #{tpu_custom_call.1} parent=51 // pred_check_branch
          %725 = sbr.rel (%p723) target = $region56
        $region55: #{tpu_custom_call.1} parent=51 // pred_region
          %s726 = smul.u32 2, %s27
          %s728 = ssub.s32 512, 512
          %729 = vsyncadd %s719, %s728
          %s730 = smul.addr %s26, 4
          %s731 = sadd.s32 %s726, %s730
          %s732 = smul.addr %s731, 128
          %s733 = scalar_lea.hbm %s8, %s732
          %s734 = sshll.u32 %s722, 4
          %s735 = int_to_ptr.vmem [resolvable:$true] %s734
          %740 = dma.vmem_to_hbm [thread:$0]  %s735, 512, %s733, %s719, 256, 256, 16
        $region56: #{tpu_custom_call.1} parent=51 // pred_fallthru
          _
      $region52: #{tpu_custom_call.1} parent=5 // pred_fallthru
        _
      %p741 = scmp.le.s32.totalorder 2, %s17
      // Predicated region
      $region57: #{tpu_custom_call.1} parent=5 // pred_check
        %p742 = pneg %p741
      $region58: #{tpu_custom_call.1} parent=5 // pred_check_branch
        %744 = sbr.rel (%p742) target = $region60
      $region59: #{tpu_custom_call.1} parent=5 // pred_region
        %s745 = ssub.s32 %s17, 2
        // Predicated region
        $region61: #{tpu_custom_call.1} parent=59 // pred_check
          %p746 = pneg %p255
        $region62: #{tpu_custom_call.1} parent=59 // pred_check_branch
          %748 = sbr.rel (%p746) target = $region64
        $region63: #{tpu_custom_call.1} parent=59 // pred_region
          %s749 = sand.u32 %s240, 1
          %s750 = scalar_lea.sflag [#allocation3], %s749
          %s751 = sand.u32 %s240, 1
          %s752 = smul.addr %s751, 32
          %s753 = scalar_lea.vmem [#allocation2], %s752
          %754 = dma.done %s750, 512
        $region64: #{tpu_custom_call.1} parent=59 // pred_fallthru
          _
      $region60: #{tpu_custom_call.1} parent=5 // pred_fallthru
        _
    $region6: #{tpu_custom_call.1} parent=1 // loop_footer
      %s21 = sadd.s32 1, %s17
    $region7: #{tpu_custom_call.1} parent=1 // loop_footer_branch
      %16 = sbr.rel target = $region3
    $region8: #{tpu_custom_call.1} parent=1 // loop_exit
      _
    %755 = vsyncpa [#allocation3], 1
    %s756 = scalar_lea.sflag [#allocation3], 1
    %757 = vsyncpa %s756, 1

</llo_original>
